<compile_context>
chip_gen: v7x
topology: tpu7x:2x2x1
jax: 0.10.0
libtpu: 0.0.40
codegen_flags: <defaults>
</compile_context>

<pallas_src>
import math

import jax
import jax.numpy as jnp
from jax import lax
from jax.experimental import pallas as pl
from jax.experimental.pallas import tpu as pltpu


def _vmem_limit_bytes():
    """Scoped-VMEM budget: ~70% of physical VMEM (v5e/v6e 128 MiB, v7x 64 MiB)."""
    try:
        cap = int(pltpu.get_tpu_info().vmem_capacity_bytes)
    except Exception:
        cap = 64 * 1024 * 1024          # conservative fallback (v7x-sized)
    return max(32 * 1024 * 1024, (cap * 7) // 10)


_VMEM_LIMIT = _vmem_limit_bytes()


def _pick_tile(n, pref, mult=8):
    """Largest tile <= pref that divides n and is a multiple of `mult`;
    falls back to the full dimension (always legal: block == full dim)."""
    if n <= pref:
        return n
    t = pref - (pref % mult)
    while t >= mult:
        if n % t == 0:
            return t
        t -= mult
    return n


# ---------------------------------------------------------------------------
# Fused multi-projection linear:  o_i = x @ W_i + b_i   (x read once)
# bf16 inputs / f32 accumulation, tiled over rows and output columns.
# ---------------------------------------------------------------------------
def _fused_linear(x2d, ws, bs, out_dtype, tm=512, tn=512):
    n = len(ws)
    M, Din = x2d.shape
    Dout = ws[0].shape[1]
    tm = _pick_tile(M, tm)
    tn = _pick_tile(Dout, tn, mult=128)

    def kernel(*refs):
        x_ref = refs[0]
        w_refs = refs[1:1 + n]
        b_refs = refs[1 + n:1 + 2 * n]
        o_refs = refs[1 + 2 * n:]
        x = x_ref[...]
        for w_ref, b_ref, o_ref in zip(w_refs, b_refs, o_refs):
            acc = jnp.dot(x, w_ref[...], preferred_element_type=jnp.float32)
            o_ref[...] = (acc + b_ref[...]).astype(o_ref.dtype)

    in_specs = ([pl.BlockSpec((tm, Din), lambda i, j: (i, 0))]
                + [pl.BlockSpec((Din, tn), lambda i, j: (0, j))] * n
                + [pl.BlockSpec((1, tn), lambda i, j: (0, j))] * n)
    out_specs = tuple(pl.BlockSpec((tm, tn), lambda i, j: (i, j)) for _ in range(n))
    out_shape = tuple(jax.ShapeDtypeStruct((M, Dout), out_dtype) for _ in range(n))

    # TODO(synk): add a K (Din) grid axis with an f32 accumulator scratch for
    # extremely large D where the full-Din blocks no longer fit in VMEM.
    outs = pl.pallas_call(
        kernel,
        out_shape=out_shape,
        grid=(M // tm, Dout // tn),
        in_specs=in_specs,
        out_specs=out_specs,
        compiler_params=pltpu.CompilerParams(
            dimension_semantics=("parallel", "parallel"),
            vmem_limit_bytes=_VMEM_LIMIT),
    )(x2d,
      *[w.astype(x2d.dtype) for w in ws],
      *[b.reshape(1, Dout).astype(jnp.float32) for b in bs])
    return outs


# ---------------------------------------------------------------------------
# Relative ("tree") attention core kernel.
# One (batch, head-group, query-tile) block per grid step.  The R-axis gather
# is a static select-CHAIN into a bias tensor (R = 2k+2 is tiny), added to the
# scores once -> no per-r adds on the VALU.
# ---------------------------------------------------------------------------
def _make_attn_kernel(HG, d_k, R, use_p2c, use_c2p):
    def kernel(q_ref, k_ref, v_ref, rq_ref, rk_ref, qpos_ref, kvt_ref,
               mask_ref, o_ref):
        # q_ref:   [TQ, HG*d_k] bf16  (scale already folded into q projection)
        # k_ref:   [SK, HG*d_k] bf16      v_ref: [SK, HG*d_k] bf16
        # rq_ref:  [HG, R, d_k] bf16  (pre-scaled)   rk_ref: [HG, R, d_k] bf16
        # qpos_ref/kvt_ref: [HG, TQ, SK] int8   mask_ref: [1|TQ, SK] int8

        # additive mask bias, computed ONCE per grid step (shared by all heads)
        neg = jnp.where(mask_ref[...] != 0, jnp.float32(-1e9), jnp.float32(0.0))

        ctxs = []
        for g in range(HG):                              # small static unroll
            lo, hi = g * d_k, (g + 1) * d_k
            q = q_ref[:, lo:hi]                          # [TQ, d_k] bf16
            k = k_ref[:, lo:hi]                          # [SK, d_k] bf16
            v = v_ref[:, lo:hi]                          # [SK, d_k] bf16

            # content-to-content (contract last dims, no explicit k.T)
            scores = lax.dot_general(
                q, k, (((1,), (1,)), ((), ())),
                preferred_element_type=jnp.float32)      # [TQ, SK] f32

            bias = neg                                   # additive bias accumulator
            if use_p2c:
                p2c = lax.dot_general(
                    rq_ref[g], k, (((1,), (1,)), ((), ())),
                    preferred_element_type=jnp.float32)  # [R, SK]
                qpos = qpos_ref[g]                       # [TQ, SK] int8 (no cast)
                # R-way gather as a pure select chain
                p2c_b = jnp.broadcast_to(p2c[0][None, :], scores.shape)
                for r in range(1, R):
                    p2c_b = jnp.where(qpos == jnp.int8(r), p2c[r][None, :], p2c_b)
                bias = bias + p2c_b
            if use_c2p:
                c2p = lax.dot_general(
                    q, rk_ref[g], (((1,), (1,)), ((), ())),
                    preferred_element_type=jnp.float32)  # [TQ, R]
                kvt = kvt_ref[g]                         # [TQ, SK] int8 (pre-transposed)
                c2p_b = jnp.broadcast_to(c2p[:, 0][:, None], scores.shape)
                for r in range(1, R):
                    c2p_b = jnp.where(kvt == jnp.int8(r), c2p[:, r][:, None], c2p_b)
                bias = bias + c2p_b

            scores = scores + bias

            # row-wise softmax (f32), reciprocal on the EUP slot
            smax = jnp.max(scores, axis=-1, keepdims=True)
            e = jnp.exp(scores - smax)
            denom = jnp.sum(e, axis=-1, keepdims=True)
            probs = e * pl.reciprocal(denom, approx=True)

            ctx = jnp.dot(probs.astype(v.dtype), v,
                          preferred_element_type=jnp.float32)   # [TQ, d_k]
            ctxs.append(ctx.astype(o_ref.dtype))

        # one lane-dense full-width store (no per-head masked vst)
        o_ref[...] = ctxs[0] if HG == 1 else jnp.concatenate(ctxs, axis=-1)

    return kernel


def _attention(q3, k3, v3, rq, rk, qpos_i8, kvt_i8, mask_i8,
               *, use_p2c, use_c2p, tq=256):
    B, S, D = q3.shape
    SK = k3.shape[1]
    H, R, d_k = rq.shape

    # heads per grid step: keep the per-step block width a multiple of 128
    # lanes (or the full D) so loads/stores and the output block are lane-dense.
    if d_k % 128 == 0:
        HG = 1
    elif (128 % d_k == 0) and (H % (128 // d_k) == 0):
        HG = 128 // d_k
    else:
        HG = H
    HGW = HG * d_k
    NG = H // HG

    # keep per-step VMEM (k/v + int8 index streams + f32 score temporaries)
    # bounded for v7x's 64 MiB VMEM at long sequence lengths
    tq_pref = tq if SK <= 4096 else 128
    TQ = _pick_tile(S, tq_pref)
    nq = S // TQ

    Mq = mask_i8.shape[2]
    mq_blk = 1 if Mq == 1 else TQ
    if Mq == 1:
        mask_map = lambda b, hg, qi: (b, 0, 0, 0)
    else:
        mask_map = lambda b, hg, qi: (b, 0, qi, 0)

    kernel = _make_attn_kernel(HG, d_k, R, use_p2c, use_c2p)

    return pl.pallas_call(
        kernel,
        out_shape=jax.ShapeDtypeStruct((B, S, D), jnp.bfloat16),
        grid=(B, NG, nq),
        in_specs=[
            pl.BlockSpec((None, TQ, HGW), lambda b, hg, qi: (b, qi, hg)),       # q
            pl.BlockSpec((None, SK, HGW), lambda b, hg, qi: (b, 0, hg)),        # k
            pl.BlockSpec((None, SK, HGW), lambda b, hg, qi: (b, 0, hg)),        # v
            pl.BlockSpec((HG, R, d_k), lambda b, hg, qi: (hg, 0, 0)),           # rel_q*scale
            pl.BlockSpec((HG, R, d_k), lambda b, hg, qi: (hg, 0, 0)),           # rel_k
            pl.BlockSpec((None, HG, TQ, SK), lambda b, hg, qi: (b, hg, qi, 0)),  # q_pos (i8)
            pl.BlockSpec((None, HG, TQ, SK), lambda b, hg, qi: (b, hg, qi, 0)),  # kv_pos^T (i8)
            pl.BlockSpec((None, None, mq_blk, SK), mask_map),                   # mask (i8)
        ],
        out_specs=pl.BlockSpec((None, TQ, HGW), lambda b, hg, qi: (b, qi, hg)),
        compiler_params=pltpu.CompilerParams(
            dimension_semantics=("parallel", "parallel", "parallel"),
            vmem_limit_bytes=_VMEM_LIMIT),
    )(q3, k3, v3, rq, rk, qpos_i8, kvt_i8, mask_i8)


# ---------------------------------------------------------------------------
# Full MHTreeAttention forward
# ---------------------------------------------------------------------------
def mh_tree_attention(hidden, pos_indices, mask_bool, params, *, num_heads,
                      with_dis_attn, rel_q=None, rel_k=None,
                      cross_state=None, cross_pos_indices=None):
    B, S, D = hidden.shape
    H = num_heads
    d_k = D // H

    scale_factor = 1 + int(rel_k is not None) + int(rel_q is not None)
    scale = 1.0 / math.sqrt(d_k * scale_factor)

    bf = jnp.bfloat16
    x2d = hidden.reshape(B * S, D).astype(bf)

    wq_s = params["wq"] * scale          # fold the attention scale into q proj
    bq_s = params["bq"] * scale

    if cross_state is None:
        # Self-attention: ONE fused projection call, hidden read from HBM once,
        # q/k/v emitted as three separate [M, D] outputs (no XLA column slices).
        q2d, k2d, v2d = _fused_linear(
            x2d, (wq_s, params["wk"], params["wv"]),
            (bq_s, params["bk"], params["bv"]), bf)
        SK = S
    else:
        c2d = cross_state.reshape(-1, D).astype(bf)
        SK = cross_state.shape[1]
        (q2d,) = _fused_linear(x2d, (wq_s,), (bq_s,), bf)
        k2d, v2d = _fused_linear(c2d, (params["wk"], params["wv"]),
                                 (params["bk"], params["bv"]), bf)

    # free reshapes (row-major metadata only)
    q3 = q2d.reshape(B, S, D)
    k3 = k2d.reshape(B, SK, D)
    v3 = v2d.reshape(B, SK, D)

    use_p2c = with_dis_attn and (rel_q is not None)
    use_c2p = with_dis_attn and (rel_k is not None)

    if rel_q is not None:
        R = rel_q.shape[2]
    elif rel_k is not None:
        R = rel_k.shape[2]
    else:
        R = 1
    assert R <= 127, "R = 2k+2 must fit in int8 for the index streams"

    # rel tensors [1,H,R,d_k] -> [H,R,d_k]; rel_q is pre-scaled (as in torch).
    rq = ((rel_q.reshape(H, R, d_k) * scale).astype(bf)
          if rel_q is not None else jnp.zeros((H, R, d_k), bf))
    rk = (rel_k.reshape(H, R, d_k).astype(bf)
          if rel_k is not None else jnp.zeros((H, R, d_k), bf))

    # int8 index streams (R << 128); cast BEFORE the transpose so the XLA
    # pre-transpose of the largest tensor moves 4x fewer bytes.
    pi8 = pos_indices.astype(jnp.int8)
    qpos_i8 = pi8 if cross_pos_indices is None else cross_pos_indices.astype(jnp.int8)
    kvt_i8 = jnp.swapaxes(pi8, -1, -2)
    mask_i8 = mask_bool.astype(jnp.int8)

    # Attention writes straight into the [B, S, H*d_k] context layout
    # (no head transposes before / after the kernel).
    ctx3 = _attention(q3, k3, v3, rq, rk, qpos_i8, kvt_i8, mask_i8,
                      use_p2c=use_p2c, use_c2p=use_c2p)            # [B,S,D] bf16

    (out,) = _fused_linear(ctx3.reshape(B * S, D),
                           (params["wo"],), (params["bo"],), jnp.float32)
    return out.reshape(B, S, D)


# ---------------------------------------------------------------------------
# Pure-JAX reference (mirrors the PyTorch forward, eval-mode dropout)
# ---------------------------------------------------------------------------
def reference_forward(hidden, pos_indices, mask_bool, params, *, num_heads,
                      with_dis_attn, rel_q, rel_k):
    B, S, D = hidden.shape
    d_k = D // num_heads

    def lin(x, w, b):
        return x @ w + b

    q = lin(hidden, params["wq"], params["bq"]).reshape(B, S, num_heads, d_k).transpose(0, 2, 1, 3)
    k = lin(hidden, params["wk"], params["bk"]).reshape(B, S, num_heads, d_k).transpose(0, 2, 1, 3)
    v = lin(hidden, params["wv"], params["bv"]).reshape(B, S, num_heads, d_k).transpose(0, 2, 1, 3)

    sf = 1 + int(rel_k is not None) + int(rel_q is not None)
    scale = 1.0 / math.sqrt(d_k * sf)
    scores = jnp.einsum("bhid,bhjd->bhij", q, k) * scale
    if rel_q is not None and with_dis_attn:
        p2c = jnp.einsum("xhrd,bhjd->bhrj", rel_q * scale, k)
        scores = scores + jnp.take_along_axis(p2c, pos_indices, axis=-2)
    if rel_k is not None and with_dis_attn:
        c2p = jnp.einsum("bhid,xhrd->bhir", q, rel_k) * scale
        scores = scores + jnp.take_along_axis(
            c2p, jnp.swapaxes(pos_indices, -1, -2), axis=-1)
    scores = jnp.where(mask_bool, -1e9, scores)
    probs = jax.nn.softmax(scores, axis=-1)
    ctx = jnp.einsum("bhij,bhjd->bhid", probs, v)
    out = ctx.transpose(0, 2, 1, 3).reshape(B, S, D)
    return lin(out, params["wo"], params["bo"])


# ---------------------------------------------------------------------------
def init_params(key, d_model):
    bound = 1.0 / math.sqrt(d_model)   # torch nn.Linear default init
    names = ["q", "k", "v", "o"]
    params = {}
    keys = jax.random.split(key, 2 * len(names))
    for i, n in enumerate(names):
        params["w" + n] = jax.random.uniform(
            keys[2 * i], (d_model, d_model), jnp.float32, -bound, bound)
        params["b" + n] = jax.random.uniform(
            keys[2 * i + 1], (d_model,), jnp.float32, -bound, bound)
    return params


if __name__ == "__main__":
    B, S, D, H = 2, 8, 32, 4
    d_k = D // H
    k_rel = 3
    R = 2 * k_rel + 2

    root = jax.random.PRNGKey(0)
    k_par, k_x, k_pos, k_rq, k_rk = jax.random.split(root, 5)

    params = init_params(k_par, D)
    hidden = jax.random.normal(k_x, (B, S, D), jnp.float32)
    pos_indices = jax.random.randint(k_pos, (B, H, S, S), 0, R, jnp.int32)
    # mask out the tail of each sequence (True = masked)
    valid_lens = jnp.array([6, 7])
    mask = (jnp.arange(S)[None, :] >= valid_lens[:, None]).reshape(B, 1, 1, S)
    rel_q = 0.1 * jax.random.normal(k_rq, (1, H, R, d_k), jnp.float32)
    rel_k = 0.1 * jax.random.normal(k_rk, (1, H, R, d_k), jnp.float32)

    out = mh_tree_attention(hidden, pos_indices, mask, params,
                            num_heads=H, with_dis_attn=True,
                            rel_q=rel_q, rel_k=rel_k)
    out = jax.block_until_ready(out)

    ref = reference_forward(hidden, pos_indices, mask, params,
                            num_heads=H, with_dis_attn=True,
                            rel_q=rel_q, rel_k=rel_k)
    ref = jax.block_until_ready(ref)

    assert out.shape == (B, S, D)
    assert bool(jnp.allclose(out, ref, rtol=2e-2, atol=2e-2)), "mismatch vs reference"
    print("KERNEL_OK")
</pallas_src>

<mosaic_0001>
module attributes {stable_mosaic.version = 11 : i64} {
  func.func @kernel(%arg0: i32, %arg1: i32, %arg2: memref<16x32xbf16, #tpu.memory_space<vmem>>, %arg3: memref<32x32xbf16, #tpu.memory_space<vmem>>, %arg4: memref<32x32xbf16, #tpu.memory_space<vmem>>, %arg5: memref<32x32xbf16, #tpu.memory_space<vmem>>, %arg6: memref<1x32xf32, #tpu.memory_space<vmem>>, %arg7: memref<1x32xf32, #tpu.memory_space<vmem>>, %arg8: memref<1x32xf32, #tpu.memory_space<vmem>>, %arg9: memref<16x32xbf16, #tpu.memory_space<vmem>>, %arg10: memref<16x32xbf16, #tpu.memory_space<vmem>>, %arg11: memref<16x32xbf16, #tpu.memory_space<vmem>>) attributes {dimension_semantics = [#tpu.dimension_semantics<parallel>, #tpu.dimension_semantics<parallel>], iteration_bounds = array<i64: 1, 1>, scalar_prefetch = 0 : i64, scratch_operands = 0 : i64, tpu.core_type = #tpu.core_type<tc>, window_params = [{transform_indices = @transform_0, window_bounds = array<i64: 16, 32>}, {transform_indices = @transform_1, window_bounds = array<i64: 32, 32>}, {transform_indices = @transform_2, window_bounds = array<i64: 32, 32>}, {transform_indices = @transform_3, window_bounds = array<i64: 32, 32>}, {transform_indices = @transform_4, window_bounds = array<i64: 1, 32>}, {transform_indices = @transform_5, window_bounds = array<i64: 1, 32>}, {transform_indices = @transform_6, window_bounds = array<i64: 1, 32>}, {transform_indices = @transform_7, window_bounds = array<i64: 16, 32>}, {transform_indices = @transform_8, window_bounds = array<i64: 16, 32>}, {transform_indices = @transform_9, window_bounds = array<i64: 16, 32>}]} {
    %c0 = arith.constant 0 : index
    %c0_0 = arith.constant 0 : index
    %0 = vector.load %arg2[%c0, %c0_0] : memref<16x32xbf16, #tpu.memory_space<vmem>>, vector<16x32xbf16>
    %c0_1 = arith.constant 0 : index
    %c0_2 = arith.constant 0 : index
    %1 = vector.load %arg3[%c0_1, %c0_2] : memref<32x32xbf16, #tpu.memory_space<vmem>>, vector<32x32xbf16>
    %cst = arith.constant dense<0.000000e+00> : vector<16x32xf32>
    %2 = tpu.matmul %0, %1, %cst {dimension_numbers = #tpu.dot_dimension_numbers<[1], [0], [0], [1], [0, 0, 1, 1], [], []>} : vector<16x32xbf16>, vector<32x32xbf16>, vector<16x32xf32> -> vector<16x32xf32>
    %c0_3 = arith.constant 0 : index
    %c0_4 = arith.constant 0 : index
    %3 = vector.load %arg6[%c0_3, %c0_4] : memref<1x32xf32, #tpu.memory_space<vmem>>, vector<1x32xf32>
    %4 = vector.broadcast %3 : vector<1x32xf32> to vector<16x32xf32>
    %5 = arith.addf %2, %4 : vector<16x32xf32>
    %6 = arith.truncf %5 : vector<16x32xf32> to vector<16x32xbf16>
    %c0_5 = arith.constant 0 : index
    %c0_6 = arith.constant 0 : index
    %7 = vector.load %arg9[%c0_5, %c0_6] : memref<16x32xbf16, #tpu.memory_space<vmem>>, vector<16x32xbf16>
    tpu.vector_store %arg9[%c0_5, %c0_6], %6 {strides = array<i32>} : memref<16x32xbf16, #tpu.memory_space<vmem>>, vector<16x32xbf16>,
    %c0_7 = arith.constant 0 : index
    %c0_8 = arith.constant 0 : index
    %8 = vector.load %arg4[%c0_7, %c0_8] : memref<32x32xbf16, #tpu.memory_space<vmem>>, vector<32x32xbf16>
    %cst_9 = arith.constant dense<0.000000e+00> : vector<16x32xf32>
    %9 = tpu.matmul %0, %8, %cst_9 {dimension_numbers = #tpu.dot_dimension_numbers<[1], [0], [0], [1], [0, 0, 1, 1], [], []>} : vector<16x32xbf16>, vector<32x32xbf16>, vector<16x32xf32> -> vector<16x32xf32>
    %c0_10 = arith.constant 0 : index
    %c0_11 = arith.constant 0 : index
    %10 = vector.load %arg7[%c0_10, %c0_11] : memref<1x32xf32, #tpu.memory_space<vmem>>, vector<1x32xf32>
    %11 = vector.broadcast %10 : vector<1x32xf32> to vector<16x32xf32>
    %12 = arith.addf %9, %11 : vector<16x32xf32>
    %13 = arith.truncf %12 : vector<16x32xf32> to vector<16x32xbf16>
    %c0_12 = arith.constant 0 : index
    %c0_13 = arith.constant 0 : index
    %14 = vector.load %arg10[%c0_12, %c0_13] : memref<16x32xbf16, #tpu.memory_space<vmem>>, vector<16x32xbf16>
    tpu.vector_store %arg10[%c0_12, %c0_13], %13 {strides = array<i32>} : memref<16x32xbf16, #tpu.memory_space<vmem>>, vector<16x32xbf16>,
    %c0_14 = arith.constant 0 : index
    %c0_15 = arith.constant 0 : index
    %15 = vector.load %arg5[%c0_14, %c0_15] : memref<32x32xbf16, #tpu.memory_space<vmem>>, vector<32x32xbf16>
    %cst_16 = arith.constant dense<0.000000e+00> : vector<16x32xf32>
    %16 = tpu.matmul %0, %15, %cst_16 {dimension_numbers = #tpu.dot_dimension_numbers<[1], [0], [0], [1], [0, 0, 1, 1], [], []>} : vector<16x32xbf16>, vector<32x32xbf16>, vector<16x32xf32> -> vector<16x32xf32>
    %c0_17 = arith.constant 0 : index
    %c0_18 = arith.constant 0 : index
    %17 = vector.load %arg8[%c0_17, %c0_18] : memref<1x32xf32, #tpu.memory_space<vmem>>, vector<1x32xf32>
    %18 = vector.broadcast %17 : vector<1x32xf32> to vector<16x32xf32>
    %19 = arith.addf %16, %18 : vector<16x32xf32>
    %20 = arith.truncf %19 : vector<16x32xf32> to vector<16x32xbf16>
    %c0_19 = arith.constant 0 : index
    %c0_20 = arith.constant 0 : index
    %21 = vector.load %arg11[%c0_19, %c0_20] : memref<16x32xbf16, #tpu.memory_space<vmem>>, vector<16x32xbf16>
    tpu.vector_store %arg11[%c0_19, %c0_20], %20 {strides = array<i32>} : memref<16x32xbf16, #tpu.memory_space<vmem>>, vector<16x32xbf16>,
    return
  }
  func.func @transform_0(%arg0: i32, %arg1: i32) -> (i32, i32) {
    %c0_i32 = arith.constant 0 : i32
    %c0_i32_0 = arith.constant 0 : i32
    return %arg0, %c0_i32 : i32, i32
  }
  func.func @transform_1(%arg0: i32, %arg1: i32) -> (i32, i32) {
    %c0_i32 = arith.constant 0 : i32
    %c0_i32_0 = arith.constant 0 : i32
    return %c0_i32, %arg1 : i32, i32
  }
  func.func @transform_2(%arg0: i32, %arg1: i32) -> (i32, i32) {
    %c0_i32 = arith.constant 0 : i32
    %c0_i32_0 = arith.constant 0 : i32
    return %c0_i32, %arg1 : i32, i32
  }
  func.func @transform_3(%arg0: i32, %arg1: i32) -> (i32, i32) {
    %c0_i32 = arith.constant 0 : i32
    %c0_i32_0 = arith.constant 0 : i32
    return %c0_i32, %arg1 : i32, i32
  }
  func.func @transform_4(%arg0: i32, %arg1: i32) -> (i32, i32) {
    %c0_i32 = arith.constant 0 : i32
    %c0_i32_0 = arith.constant 0 : i32
    return %c0_i32, %arg1 : i32, i32
  }
  func.func @transform_5(%arg0: i32, %arg1: i32) -> (i32, i32) {
    %c0_i32 = arith.constant 0 : i32
    %c0_i32_0 = arith.constant 0 : i32
    return %c0_i32, %arg1 : i32, i32
  }
  func.func @transform_6(%arg0: i32, %arg1: i32) -> (i32, i32) {
    %c0_i32 = arith.constant 0 : i32
    %c0_i32_0 = arith.constant 0 : i32
    return %c0_i32, %arg1 : i32, i32
  }
  func.func @transform_7(%arg0: i32, %arg1: i32) -> (i32, i32) {
    %c0_i32 = arith.constant 0 : i32
    return %arg0, %arg1 : i32, i32
  }
  func.func @transform_8(%arg0: i32, %arg1: i32) -> (i32, i32) {
    %c0_i32 = arith.constant 0 : i32
    return %arg0, %arg1 : i32, i32
  }
  func.func @transform_9(%arg0: i32, %arg1: i32) -> (i32, i32) {
    %c0_i32 = arith.constant 0 : i32
    return %arg0, %arg1 : i32, i32
  }
}

</mosaic_0001>

<llo_original>
// kernel: tpu_custom_call.1
$region0: #{tpu_custom_call.1}
  #allocation0 [shape = 'u32[]', space=smem, size = 0x4, offset = 0x4, fixed_abs, tag = 'smem constant byte address 0x4 - core index']
  #allocation1 [shape = 'u32[144,128]{1,0:T(1,128)}', space=vmem, size = 0x12000, scoped, tag = 'internal scratch']
  %s0 = inlined_call_operand.hbm [shape: bf16[16,32], index: 0, kind: input, shape index: {}]
  %s1 = inlined_call_operand.hbm [shape: bf16[32,32], index: 1, kind: input, shape index: {}]
  %s2 = inlined_call_operand.hbm [shape: bf16[32,32], index: 2, kind: input, shape index: {}]
  %s3 = inlined_call_operand.hbm [shape: bf16[32,32], index: 3, kind: input, shape index: {}]
  %s4 = inlined_call_operand.vmem [shape: f32[1,32], index: 4, kind: input, shape index: {}]
  %s5 = inlined_call_operand.vmem [shape: f32[1,32], index: 5, kind: input, shape index: {}]
  %s6 = inlined_call_operand.vmem [shape: f32[1,32], index: 6, kind: input, shape index: {}]
  %s7 = inlined_call_operand.hbm [shape: bf16[16,32], index: 7, kind: output, shape index: {0}]
  %s8 = inlined_call_operand.hbm [shape: bf16[16,32], index: 8, kind: output, shape index: {1}]
  %s9 = inlined_call_operand.hbm [shape: bf16[16,32], index: 9, kind: output, shape index: {2}]
  %10 = xla_tuple %s7, %s8, %s9
  %s11 = sld [smem:[#allocation0]]
  $region70: #{tpu_custom_call.1} parent=0
    _
  %s13 = ssub.s32 1, %s11
  %s14 = scalar_select 0, %s13, %s11
  $region1: #{tpu_custom_call.1} parent=0
    #allocation2 [shape = 'u8[4096]{0}', space=vmem, size = 0x1000, scoped, tag = 'input window, operand 0, single buffered']
    #allocation3 [shape = 's32[1]{0}', space=sflag, size = 0x4, scoped, tag = 'scoped memory for tpu_custom_call.1']
    #allocation4 [shape = 's32[1]{0}', space=sflag, size = 0x4, scoped, tag = 'scoped memory for tpu_custom_call.1']
    #allocation5 [shape = 'u8[8192]{0}', space=vmem, size = 0x2000, scoped, tag = 'input window, operand 1, single buffered']
    #allocation6 [shape = 's32[1]{0}', space=sflag, size = 0x4, scoped, tag = 'scoped memory for tpu_custom_call.1']
    #allocation7 [shape = 'u8[8192]{0}', space=vmem, size = 0x2000, scoped, tag = 'input window, operand 2, single buffered']
    #allocation8 [shape = 'u8[8192]{0}', space=vmem, size = 0x2000, scoped, tag = 'input window, operand 3, single buffered']
    #allocation9 [shape = 's32[1]{0}', space=sflag, size = 0x4, scoped, tag = 'scoped memory for tpu_custom_call.1']
    #allocation10 [shape = 'u8[4096]{0}', space=vmem, size = 0x1000, scoped, tag = 'output window, operand 0, single buffered']
    #allocation11 [shape = 'u8[4096]{0}', space=vmem, size = 0x1000, scoped, tag = 'output window, operand 1, single buffered']
    #allocation12 [shape = 's32[1]{0}', space=sflag, size = 0x4, scoped, tag = 'scoped memory for tpu_custom_call.1']
    #allocation13 [shape = 'u8[4096]{0}', space=vmem, size = 0x1000, scoped, tag = 'output window, operand 2, single buffered']
    %15 = vsyncpa [#allocation3], 0
    %16 = vsyncpa [#allocation6], 0
    %17 = vsyncpa [#allocation9], 0
    %18 = vsyncpa [#allocation4], 0
    %19 = vsyncpa [#allocation12], 0
    // Predicated region
    $region2: #{tpu_custom_call.1} parent=1 // pred_check
      _
    $region3: #{tpu_custom_call.1} parent=1 // pred_check_branch
      %21 = sbr.rel (0) target = $region5
    $region4: #{tpu_custom_call.1} parent=1 // pred_region
      %s23 = ssub.s32 128, 128
      %24 = vsyncadd [#allocation3], %s23
      %s25 = sshll.u32 [#allocation2], 4
      %s26 = int_to_ptr.vmem [resolvable:$true] %s25
      %31 = dma.hbm_to_vmem [thread:$0]  %s0, 128, %s26, [#allocation3], 64, 64, 4
    $region5: #{tpu_custom_call.1} parent=1 // pred_fallthru
      _
    // Predicated region
    $region6: #{tpu_custom_call.1} parent=1 // pred_check
      _
    $region7: #{tpu_custom_call.1} parent=1 // pred_check_branch
      %33 = sbr.rel (0) target = $region9
    $region8: #{tpu_custom_call.1} parent=1 // pred_region
      %s35 = ssub.s32 256, 256
      %36 = vsyncadd [#allocation6], %s35
      %s37 = sshll.u32 [#allocation5], 4
      %s38 = int_to_ptr.vmem [resolvable:$true] %s37
      %43 = dma.hbm_to_vmem [thread:$0]  %s1, 256, %s38, [#allocation6], 64, 64, 4
    $region9: #{tpu_custom_call.1} parent=1 // pred_fallthru
      _
    // Predicated region
    $region10: #{tpu_custom_call.1} parent=1 // pred_check
      _
    $region11: #{tpu_custom_call.1} parent=1 // pred_check_branch
      %45 = sbr.rel (0) target = $region13
    $region12: #{tpu_custom_call.1} parent=1 // pred_region
      %s47 = ssub.s32 256, 256
      %48 = vsyncadd [#allocation6], %s47
      %s49 = sshll.u32 [#allocation7], 4
      %s50 = int_to_ptr.vmem [resolvable:$true] %s49
      %55 = dma.hbm_to_vmem [thread:$0]  %s2, 256, %s50, [#allocation6], 64, 64, 4
    $region13: #{tpu_custom_call.1} parent=1 // pred_fallthru
      _
    // Predicated region
    $region14: #{tpu_custom_call.1} parent=1 // pred_check
      _
    $region15: #{tpu_custom_call.1} parent=1 // pred_check_branch
      %57 = sbr.rel (0) target = $region17
    $region16: #{tpu_custom_call.1} parent=1 // pred_region
      %s59 = ssub.s32 256, 256
      %60 = vsyncadd [#allocation9], %s59
      %s61 = sshll.u32 [#allocation8], 4
      %s62 = int_to_ptr.vmem [resolvable:$true] %s61
      %67 = dma.hbm_to_vmem [thread:$0]  %s3, 256, %s62, [#allocation9], 64, 64, 4
    $region17: #{tpu_custom_call.1} parent=1 // pred_fallthru
      _
    // Predicated region
    $region18: #{tpu_custom_call.1} parent=1 // pred_check
      _
    $region19: #{tpu_custom_call.1} parent=1 // pred_check_branch
      %69 = sbr.rel (0) target = $region21
    $region20: #{tpu_custom_call.1} parent=1 // pred_region
      _
    $region21: #{tpu_custom_call.1} parent=1 // pred_fallthru
      _
    // Predicated region
    $region22: #{tpu_custom_call.1} parent=1 // pred_check
      _
    $region23: #{tpu_custom_call.1} parent=1 // pred_check_branch
      %71 = sbr.rel (0) target = $region25
    $region24: #{tpu_custom_call.1} parent=1 // pred_region
      _
    $region25: #{tpu_custom_call.1} parent=1 // pred_fallthru
      _
    // Predicated region
    $region26: #{tpu_custom_call.1} parent=1 // pred_check
      _
    $region27: #{tpu_custom_call.1} parent=1 // pred_check_branch
      %73 = sbr.rel (0) target = $region29
    $region28: #{tpu_custom_call.1} parent=1 // pred_region
      _
    $region29: #{tpu_custom_call.1} parent=1 // pred_fallthru
      _
    // Predicated region
    $region30: #{tpu_custom_call.1} parent=1 // pred_check
      _
    $region31: #{tpu_custom_call.1} parent=1 // pred_check_branch
      %75 = sbr.rel (0) target = $region33
    $region32: #{tpu_custom_call.1} parent=1 // pred_region
      %76 = dma.done [#allocation3], 128
    $region33: #{tpu_custom_call.1} parent=1 // pred_fallthru
      _
    // Predicated region
    $region34: #{tpu_custom_call.1} parent=1 // pred_check
      _
    $region35: #{tpu_custom_call.1} parent=1 // pred_check_branch
      %78 = sbr.rel (0) target = $region37
    $region36: #{tpu_custom_call.1} parent=1 // pred_region
      %79 = dma.done [#allocation6], 256
    $region37: #{tpu_custom_call.1} parent=1 // pred_fallthru
      _
    // Predicated region
    $region38: #{tpu_custom_call.1} parent=1 // pred_check
      _
    $region39: #{tpu_custom_call.1} parent=1 // pred_check_branch
      %81 = sbr.rel (0) target = $region41
    $region40: #{tpu_custom_call.1} parent=1 // pred_region
      %82 = dma.done [#allocation6], 256
    $region41: #{tpu_custom_call.1} parent=1 // pred_fallthru
      _
    // Predicated region
    $region42: #{tpu_custom_call.1} parent=1 // pred_check
      _
    $region43: #{tpu_custom_call.1} parent=1 // pred_check_branch
      %84 = sbr.rel (0) target = $region45
    $region44: #{tpu_custom_call.1} parent=1 // pred_region
      %85 = dma.done [#allocation9], 256
    $region45: #{tpu_custom_call.1} parent=1 // pred_fallthru
      _
    %v87 = vld [vmem:[#allocation2] sm:$0xf]
    %v88 = vld [vmem:[#allocation2 + $0x4] sm:$0xf]
    %v89 = vld [vmem:[#allocation5] sm:$0xf]
    %v90 = vld [vmem:[#allocation5 + $0x4] sm:$0xf]
    %v91 = vld [vmem:[#allocation5 + $0x8] sm:$0xf]
    %v92 = vld [vmem:[#allocation5 + $0xc] sm:$0xf]
    %v93 = vld [vmem:[%s4] sm:$0x1]
    %v95 = vlaneseq
    %v96 = vshrl.u32 %v95, 7
    %v97 = vsub.s32 0, %v96
    %v98 = vrot.slane %v93, %v97
    %v102 = vunpack.c.l.b16 %v87
    %v103 = vunpack.c.l.b16 %v88
    %v104 = vpack.c.b16 %v103, %v102
    %v109 = vunpack.c.l.b16 %v89
    %v110 = vunpack.c.l.b16 %v90
    %v111 = vunpack.c.l.b16 %v91
    %v112 = vunpack.c.l.b16 %v92
    %v113 = vpack.c.b16 %v110, %v109
    %v114 = vpack.c.b16 %v112, %v111
    %vm117 = vcmask 261120
    %v119 = vsel %vm117, %v104, 0
    %121 = vmatprep.subr.bf16.mxu0 0
    %122 = vmatpush1.bf16.msra.mxu0 %v113
    %123 = vmatprep.subr.bf16.mxu0 0
    %124 = vmatpush1.bf16.msra.mxu0 %v114
    %125 = vmatprep.subr.bf16.mxu0 0
    %126 = vmatpush1.bf16.msra.mxu0 0
    %127 = vmatprep.subr.bf16.mxu0 0
    %128 = vmatpush1.bf16.msra.mxu0 0
    %129 = vmatprep.subr.bf16.mxu0 0
    %130 = vmatpush1.bf16.msra.mxu0 0
    %131 = vmatprep.subr.bf16.mxu0 0
    %132 = vmatpush1.bf16.msra.mxu0 0
    %133 = vmatprep.subr.bf16.mxu0 0
    %134 = vmatpush1.bf16.msra.mxu0 0
    %135 = vmatprep.subr.bf16.mxu0 0
    %136 = vmatpush1.bf16.msra.mxu0 0
    %137 = vmatprep.subr.bf16.mxu0 0
    %138 = vmatpush1.bf16.msra.mxu0 0
    %139 = vmatprep.subr.bf16.mxu0 0
    %140 = vmatpush1.bf16.msra.mxu0 0
    %141 = vmatprep.subr.bf16.mxu0 0
    %142 = vmatpush1.bf16.msra.mxu0 0
    %143 = vmatprep.subr.bf16.mxu0 0
    %144 = vmatpush1.bf16.msra.mxu0 0
    %145 = vmatprep.subr.bf16.mxu0 0
    %146 = vmatpush1.bf16.msra.mxu0 0
    %147 = vmatprep.subr.bf16.mxu0 0
    %148 = vmatpush1.bf16.msra.mxu0 0
    %149 = vmatprep.subr.bf16.mxu0 0
    %150 = vmatpush1.bf16.msra.mxu0 0
    %151 = vmatprep.subr.bf16.mxu0 0
    %152 = vmatpush1.bf16.msra.mxu0 0
    %153 = vmatprep.mubr.bf16.mxu0 0
    %154 = vmatmul.mubr.bf16.gmra.mrb[0].mxu0 %v119
    %v155 = vpop.f32.mrb[0].mxu0
    %v156 = vadd.f32 %v98, %v155
    %v157 = vpop.f32.mrb[0].mxu0
    %v158 = vpop.f32.mrb[0].mxu0
    %v159 = vadd.f32 %v98, %v158
    %v160 = vpop.f32.mrb[0].mxu0
    %161 = vdwg.mxu0
    %v162 = vpack.c.bf16 %v159, %v156
    %v164 = vunpack.c.l.b16 %v162
    %v165 = vunpack.c.h.b16 %v162
    %v166 = vpack.c.b16 %v164, %v164
    %v167 = vpack.c.b16 %v165, %v165
    %vm170 = vcmask 257024
    %171 = vst.msk [vmem:[#allocation10] sm:$0xf] %vm170, %v166
    %172 = vst.msk [vmem:[#allocation10 + $0x4] sm:$0xf] %vm170, %v167
    %v173 = vld [vmem:[#allocation7] sm:$0xf]
    %v174 = vld [vmem:[#allocation7 + $0x4] sm:$0xf]
    %v175 = vld [vmem:[#allocation7 + $0x8] sm:$0xf]
    %v176 = vld [vmem:[#allocation7 + $0xc] sm:$0xf]
    %v177 = vld [vmem:[%s5] sm:$0x1]
    %v179 = vlaneseq
    %v180 = vshrl.u32 %v179, 7
    %v181 = vsub.s32 0, %v180
    %v182 = vrot.slane %v177, %v181
    %v188 = vunpack.c.l.b16 %v173
    %v189 = vunpack.c.l.b16 %v174
    %v190 = vunpack.c.l.b16 %v175
    %v191 = vunpack.c.l.b16 %v176
    %v192 = vpack.c.b16 %v189, %v188
    %v193 = vpack.c.b16 %v191, %v190
    %196 = vmatprep.subr.bf16.mxu0 0
    %197 = vmatpush1.bf16.msra.mxu0 %v192
    %198 = vmatprep.subr.bf16.mxu0 0
    %199 = vmatpush1.bf16.msra.mxu0 %v193
    %200 = vmatprep.subr.bf16.mxu0 0
    %201 = vmatpush1.bf16.msra.mxu0 0
    %202 = vmatprep.subr.bf16.mxu0 0
    %203 = vmatpush1.bf16.msra.mxu0 0
    %204 = vmatprep.subr.bf16.mxu0 0
    %205 = vmatpush1.bf16.msra.mxu0 0
    %206 = vmatprep.subr.bf16.mxu0 0
    %207 = vmatpush1.bf16.msra.mxu0 0
    %208 = vmatprep.subr.bf16.mxu0 0
    %209 = vmatpush1.bf16.msra.mxu0 0
    %210 = vmatprep.subr.bf16.mxu0 0
    %211 = vmatpush1.bf16.msra.mxu0 0
    %212 = vmatprep.subr.bf16.mxu0 0
    %213 = vmatpush1.bf16.msra.mxu0 0
    %214 = vmatprep.subr.bf16.mxu0 0
    %215 = vmatpush1.bf16.msra.mxu0 0
    %216 = vmatprep.subr.bf16.mxu0 0
    %217 = vmatpush1.bf16.msra.mxu0 0
    %218 = vmatprep.subr.bf16.mxu0 0
    %219 = vmatpush1.bf16.msra.mxu0 0
    %220 = vmatprep.subr.bf16.mxu0 0
    %221 = vmatpush1.bf16.msra.mxu0 0
    %222 = vmatprep.subr.bf16.mxu0 0
    %223 = vmatpush1.bf16.msra.mxu0 0
    %224 = vmatprep.subr.bf16.mxu0 0
    %225 = vmatpush1.bf16.msra.mxu0 0
    %226 = vmatprep.subr.bf16.mxu0 0
    %227 = vmatpush1.bf16.msra.mxu0 0
    %228 = vmatprep.mubr.bf16.mxu0 0
    %229 = vmatmul.mubr.bf16.gmra.mrb[0].mxu0 %v119
    %v230 = vpop.f32.mrb[0].mxu0
    %v231 = vadd.f32 %v182, %v230
    %v232 = vpop.f32.mrb[0].mxu0
    %v233 = vpop.f32.mrb[0].mxu0
    %v234 = vadd.f32 %v182, %v233
    %v235 = vpop.f32.mrb[0].mxu0
    %236 = vdwg.mxu0
    %v237 = vpack.c.bf16 %v234, %v231
    %v239 = vunpack.c.l.b16 %v237
    %v240 = vunpack.c.h.b16 %v237
    %v241 = vpack.c.b16 %v239, %v239
    %v242 = vpack.c.b16 %v240, %v240
    %245 = vst.msk [vmem:[#allocation11] sm:$0xf] %vm170, %v241
    %246 = vst.msk [vmem:[#allocation11 + $0x4] sm:$0xf] %vm170, %v242
    %v247 = vld [vmem:[#allocation8] sm:$0xf]
    %v248 = vld [vmem:[#allocation8 + $0x4] sm:$0xf]
    %v249 = vld [vmem:[#allocation8 + $0x8] sm:$0xf]
    %v250 = vld [vmem:[#allocation8 + $0xc] sm:$0xf]
    %v251 = vld [vmem:[%s6] sm:$0x1]
    %v253 = vlaneseq
    %v254 = vshrl.u32 %v253, 7
    %v255 = vsub.s32 0, %v254
    %v256 = vrot.slane %v251, %v255
    %v262 = vunpack.c.l.b16 %v247
    %v263 = vunpack.c.l.b16 %v248
    %v264 = vunpack.c.l.b16 %v249
    %v265 = vunpack.c.l.b16 %v250
    %v266 = vpack.c.b16 %v263, %v262
    %v267 = vpack.c.b16 %v265, %v264
    %270 = vmatprep.subr.bf16.mxu0 0
    %271 = vmatpush1.bf16.msra.mxu0 %v266
    %272 = vmatprep.subr.bf16.mxu0 0
    %273 = vmatpush1.bf16.msra.mxu0 %v267
    %274 = vmatprep.subr.bf16.mxu0 0
    %275 = vmatpush1.bf16.msra.mxu0 0
    %276 = vmatprep.subr.bf16.mxu0 0
    %277 = vmatpush1.bf16.msra.mxu0 0
    %278 = vmatprep.subr.bf16.mxu0 0
    %279 = vmatpush1.bf16.msra.mxu0 0
    %280 = vmatprep.subr.bf16.mxu0 0
    %281 = vmatpush1.bf16.msra.mxu0 0
    %282 = vmatprep.subr.bf16.mxu0 0
    %283 = vmatpush1.bf16.msra.mxu0 0
    %284 = vmatprep.subr.bf16.mxu0 0
    %285 = vmatpush1.bf16.msra.mxu0 0
    %286 = vmatprep.subr.bf16.mxu0 0
    %287 = vmatpush1.bf16.msra.mxu0 0
    %288 = vmatprep.subr.bf16.mxu0 0
    %289 = vmatpush1.bf16.msra.mxu0 0
    %290 = vmatprep.subr.bf16.mxu0 0
    %291 = vmatpush1.bf16.msra.mxu0 0
    %292 = vmatprep.subr.bf16.mxu0 0
    %293 = vmatpush1.bf16.msra.mxu0 0
    %294 = vmatprep.subr.bf16.mxu0 0
    %295 = vmatpush1.bf16.msra.mxu0 0
    %296 = vmatprep.subr.bf16.mxu0 0
    %297 = vmatpush1.bf16.msra.mxu0 0
    %298 = vmatprep.subr.bf16.mxu0 0
    %299 = vmatpush1.bf16.msra.mxu0 0
    %300 = vmatprep.subr.bf16.mxu0 0
    %301 = vmatpush1.bf16.msra.mxu0 0
    %302 = vmatprep.mubr.bf16.mxu0 0
    %303 = vmatmul.mubr.bf16.gmra.mrb[0].mxu0 %v119
    %v304 = vpop.f32.mrb[0].mxu0
    %v305 = vadd.f32 %v256, %v304
    %v306 = vpop.f32.mrb[0].mxu0
    %v307 = vpop.f32.mrb[0].mxu0
    %v308 = vadd.f32 %v256, %v307
    %v309 = vpop.f32.mrb[0].mxu0
    %310 = vdwg.mxu0
    %v311 = vpack.c.bf16 %v308, %v305
    %v313 = vunpack.c.l.b16 %v311
    %v314 = vunpack.c.h.b16 %v311
    %v315 = vpack.c.b16 %v313, %v313
    %v316 = vpack.c.b16 %v314, %v314
    %319 = vst.msk [vmem:[#allocation13] sm:$0xf] %vm170, %v315
    %320 = vst.msk [vmem:[#allocation13 + $0x4] sm:$0xf] %vm170, %v316
    // Predicated region
    $region46: #{tpu_custom_call.1} parent=1 // pred_check
      _
    $region47: #{tpu_custom_call.1} parent=1 // pred_check_branch
      %322 = sbr.rel (0) target = $region49
    $region48: #{tpu_custom_call.1} parent=1 // pred_region
      %s324 = ssub.s32 128, 128
      %325 = vsyncadd [#allocation4], %s324
      %s326 = sshll.u32 [#allocation10], 4
      %s327 = int_to_ptr.vmem [resolvable:$true] %s326
      %332 = dma.vmem_to_hbm [thread:$0]  %s327, 128, %s7, [#allocation4], 64, 64, 4
    $region49: #{tpu_custom_call.1} parent=1 // pred_fallthru
      _
    // Predicated region
    $region50: #{tpu_custom_call.1} parent=1 // pred_check
      _
    $region51: #{tpu_custom_call.1} parent=1 // pred_check_branch
      %334 = sbr.rel (0) target = $region53
    $region52: #{tpu_custom_call.1} parent=1 // pred_region
      %s336 = ssub.s32 128, 128
      %337 = vsyncadd [#allocation12], %s336
      %s338 = sshll.u32 [#allocation11], 4
      %s339 = int_to_ptr.vmem [resolvable:$true] %s338
      %344 = dma.vmem_to_hbm [thread:$0]  %s339, 128, %s8, [#allocation12], 64, 64, 4
    $region53: #{tpu_custom_call.1} parent=1 // pred_fallthru
      _
    // Predicated region
    $region54: #{tpu_custom_call.1} parent=1 // pred_check
      _
    $region55: #{tpu_custom_call.1} parent=1 // pred_check_branch
      %346 = sbr.rel (0) target = $region57
    $region56: #{tpu_custom_call.1} parent=1 // pred_region
      %s348 = ssub.s32 128, 128
      %349 = vsyncadd [#allocation12], %s348
      %s350 = sshll.u32 [#allocation13], 4
      %s351 = int_to_ptr.vmem [resolvable:$true] %s350
      %356 = dma.vmem_to_hbm [thread:$0]  %s351, 128, %s9, [#allocation12], 64, 64, 4
    $region57: #{tpu_custom_call.1} parent=1 // pred_fallthru
      _
    // Predicated region
    $region58: #{tpu_custom_call.1} parent=1 // pred_check
      _
    $region59: #{tpu_custom_call.1} parent=1 // pred_check_branch
      %358 = sbr.rel (0) target = $region61
    $region60: #{tpu_custom_call.1} parent=1 // pred_region
      %359 = dma.done [#allocation4], 128
    $region61: #{tpu_custom_call.1} parent=1 // pred_fallthru
      _
    // Predicated region
    $region62: #{tpu_custom_call.1} parent=1 // pred_check
      _
    $region63: #{tpu_custom_call.1} parent=1 // pred_check_branch
      %361 = sbr.rel (0) target = $region65
    $region64: #{tpu_custom_call.1} parent=1 // pred_region
      %362 = dma.done [#allocation12], 128
    $region65: #{tpu_custom_call.1} parent=1 // pred_fallthru
      _
    // Predicated region
    $region66: #{tpu_custom_call.1} parent=1 // pred_check
      _
    $region67: #{tpu_custom_call.1} parent=1 // pred_check_branch
      %364 = sbr.rel (0) target = $region69
    $region68: #{tpu_custom_call.1} parent=1 // pred_region
      %365 = dma.done [#allocation12], 128
    $region69: #{tpu_custom_call.1} parent=1 // pred_fallthru
      _
    %366 = vsyncpa [#allocation3], 1
    %367 = vsyncpa [#allocation6], 1
    %368 = vsyncpa [#allocation9], 1
    %369 = vsyncpa [#allocation4], 1
    %370 = vsyncpa [#allocation12], 1

</llo_original>
